<compile_context>
chip_gen: v5e
topology: v5e:2x2
jax: 0.10.0
libtpu: 0.0.40
codegen_flags: <defaults>
</compile_context>

<pallas_src>
import functools

import jax
import jax.numpy as jnp
from jax import lax
from jax.experimental import pallas as pl
from jax.experimental.pallas import tpu as pltpu


def _centroid_partial_kernel(h_ref, y_ref, c_ref, cn_ref, out_ref, *, batch):
    c_id = pl.program_id(0)          # core-parallel axis
    t = pl.program_id(1)             # batch-tile axis (arbitrary / accumulating)
    nt = pl.num_programs(1)

    @pl.when(t == 0)
    def _init():
        out_ref[...] = jnp.zeros_like(out_ref)

    h = h_ref[...]                   # (tb, D), native dtype
    cen = c_ref[...]                 # (kpad, D), native dtype (zero-padded rows)
    y = y_ref[...]                   # (tb, 1) int32
    cn_row = cn_ref[...]             # (1, kpad) f32, +inf in padded lanes

    tb = h.shape[0]
    kpad = cen.shape[0]

    hf = h.astype(jnp.float32)
    # Row norms ||h_b||^2  -> (tb, 1)
    hn = jnp.sum(hf * hf, axis=1, keepdims=True)

    # Gram term h @ C^T on the MXU, f32 accumulation.
    g = lax.dot_general(h, cen, (((1,), (1,)), ((), ())),
                        preferred_element_type=jnp.float32)      # (tb, kpad)

    # norm_squared[b, k] = ||h_b - C_k||^2 ; +inf lanes (padded classes) stay
    # +inf, rounding negatives are clamped to 0.
    # TODO(synk): for bf16 inputs the Gram form loses a little precision near
    # centroids; an exact (h - C_y)^2 gather could be added if needed.
    ns = jnp.maximum(hn + cn_row - 2.0 * g, 0.0)

    # distance = norm_squared.gather(1, y); labels < num_classes so the +inf
    # padded lanes are never selected (where-select, never a multiply).
    col = lax.broadcasted_iota(jnp.int32, (1, kpad), 1)           # (1, kpad)
    distance = jnp.sum(jnp.where(col == y, ns, 0.0), axis=1, keepdims=True)

    # logsumexp(-sqrt(norm_squared), dim=1); padded lanes contribute exp(-inf)=0.
    neg_d = -jnp.sqrt(ns)
    m = jnp.max(neg_d, axis=1, keepdims=True)
    logsum = m + jnp.log(jnp.sum(jnp.exp(neg_d - m), axis=1, keepdims=True))

    # Mask ragged / out-of-range rows (NaN-safe select) and accumulate the
    # running sum of (distance + logsum) into this core's output block.
    row = lax.broadcasted_iota(jnp.int32, (tb, 1), 0) + (c_id * nt + t) * tb
    per_row = jnp.where(row < batch, distance + logsum, 0.0)
    out_ref[...] += jnp.sum(per_row)


def centroid_loss(h, y, centers, *, rho=1.0, tile_rows=None):
    """h: (B, D), y: (B,) int, centers: (K, D) -> scalar loss (f32)."""
    B, D = h.shape
    K, Dc = centers.shape
    assert Dc == D

    # Pad classes up to a full 128-lane tile (never more: EUP/VPU cost scales
    # with kpad and the MXU is not the bottleneck).
    kpad = max(128, ((K + 127) // 128) * 128)

    centers = centers.astype(h.dtype)
    cf = centers.astype(jnp.float32)
    c_pad = jnp.zeros((kpad, D), h.dtype).at[:K, :].set(centers)
    # ||C_k||^2 once, +inf in padded lanes so padded columns never matter.
    cn = jnp.sum(cf * cf, axis=1)                                   # (K,)
    cn_pad = jnp.full((1, kpad), jnp.inf, jnp.float32).at[0, :K].set(cn)

    y_in = y.astype(jnp.int32).reshape(B, 1)

    esize = jnp.dtype(h.dtype).itemsize

    # Per-generation VMEM budget (v7x: 64 MiB physical, v5e/v6e: 128 MiB).
    try:
        vmem_cap = int(pltpu.get_tpu_info().vmem_capacity_bytes)
    except Exception:
        vmem_cap = 64 * 2**20
    budget = (vmem_cap * 3) // 4

    # Rough VMEM model: double-buffered h & y tiles, resident centers +
    # center norms, ~6 f32 (tb, kpad) intermediates.
    fixed = 2 * kpad * D * esize + 2 * kpad * 4
    per_row_bytes = 2 * D * esize + 2 * 4 + 6 * kpad * 4
    tb_fit = max(8, (((budget - fixed) // per_row_bytes) // 8) * 8)
    if tile_rows is None:
        target = 2048 if vmem_cap >= 96 * 2**20 else 1024
    else:
        target = int(tile_rows)
    target = max(8, ((target + 7) // 8) * 8)
    b_up = ((B + 7) // 8) * 8
    tb = max(8, min(target, tb_fit, b_up))

    nblocks = -(-B // tb)                       # ceil(B / tb)
    ncore = 2 if nblocks >= 2 else 1            # split batch tiles across 2 TCs
    nt = -(-nblocks // ncore)
    max_blk = nblocks - 1

    def hy_map(c, t):
        # Clamp so an odd block count never produces a fully out-of-bounds
        # DMA; clamped steps are fully masked by the `row < batch` select.
        return (jnp.minimum(c * nt + t, max_blk), 0)

    vmem_est = fixed + tb * per_row_bytes + 2 * ncore * 8 * 128 * 4
    vmem_limit = int(min(budget, max(32 * 2**20, 2 * vmem_est)))

    flops = int(2 * nblocks * tb * kpad * D + 10 * nblocks * tb * kpad)
    transcendentals = int(3 * nblocks * tb * kpad)
    bytes_accessed = int(B * D * esize + kpad * D * esize + B * 4
                         + kpad * 4 + ncore * 8 * 128 * 4)

    kernel = functools.partial(_centroid_partial_kernel, batch=B)

    # Per-core partial sums, lane-dense (1, 8, 128) output block per core.
    # (For very large D the constant centers block could additionally be
    # single-buffered with pipeline_mode=pl.Buffered(1).)
    partials = pl.pallas_call(
        kernel,
        out_shape=jax.ShapeDtypeStruct((ncore, 8, 128), jnp.float32),
        grid_spec=pltpu.PrefetchScalarGridSpec(
            num_scalar_prefetch=0,
            grid=(ncore, nt),
            in_specs=[
                pl.BlockSpec((tb, D), hy_map),                   # h tile
                pl.BlockSpec((tb, 1), hy_map),                   # labels tile
                pl.BlockSpec((kpad, D), lambda c, t: (0, 0)),    # centers (resident)
                pl.BlockSpec((1, kpad), lambda c, t: (0, 0)),    # ||C||^2 (resident)
            ],
            out_specs=pl.BlockSpec((1, 8, 128), lambda c, t: (c, 0, 0)),
        ),
        compiler_params=pltpu.CompilerParams(
            dimension_semantics=("parallel", "arbitrary"),
            vmem_limit_bytes=vmem_limit),
        cost_estimate=pl.CostEstimate(
            flops=flops, transcendentals=transcendentals,
            bytes_accessed=bytes_accessed),
    )(h, y_in, c_pad, cn_pad)

    loss_mean = jnp.sum(partials[:, 0, 0]) / B

    # Centroid-separation regularizer: O(K^2 * D) — trivially cheap, done in
    # plain JAX so the kernel's batch axis can be core-parallel without an
    # epilogue race.  log(min) == min(log) (monotonic).
    pd = jnp.sum((cf[:, None, :] - cf[None, :, :]) ** 2, axis=2)
    pd = jnp.where(jnp.eye(K, dtype=bool), jnp.inf, pd)
    reg = jnp.sum(-jnp.log(jnp.min(pd, axis=-1)))

    return loss_mean + rho * reg


def _reference_loss(h, y, C, rho=1.0):
    """Pure-JAX mirror of the PyTorch CentroidLoss forward (for checking)."""
    ns = jnp.sum((h[:, None, :] - C[None, :, :]) ** 2, axis=2)
    dist = jnp.take_along_axis(ns, y[:, None], axis=1)[:, 0]
    logsum = jax.scipy.special.logsumexp(-jnp.sqrt(ns), axis=1)
    loss = jnp.mean(dist + logsum)
    K = C.shape[0]
    pd = jnp.sum((C[:, None, :] - C[None, :, :]) ** 2, axis=2)
    pd = jnp.where(jnp.eye(K, dtype=bool), jnp.inf, pd)
    reg = jnp.sum(-jnp.min(jnp.log(pd), axis=-1))
    return loss + rho * reg


if __name__ == "__main__":
    key = jax.random.PRNGKey(0)
    k_h, k_y, k_c, k_h2, k_y2, k_c2 = jax.random.split(key, 6)

    # Small shapes consistent with CentroidLoss(feat_dim, num_classes).
    B, feat_dim, num_classes = 8, 32, 4
    h = jax.random.normal(k_h, (B, feat_dim), dtype=jnp.float32)
    y = jax.random.randint(k_y, (B,), 0, num_classes, dtype=jnp.int32)
    centers = jax.random.normal(k_c, (num_classes, feat_dim), dtype=jnp.float32)

    loss = centroid_loss(h, y, centers)
    jax.block_until_ready(loss)
    expected = _reference_loss(h, y, centers)
    err = abs(float(loss) - float(expected))
    assert err <= 0.1 + 0.01 * abs(float(expected)), (float(loss), float(expected))

    # Second check: ragged last tile, odd block count (clamped index_map) and
    # the 2-way core-parallel grid axis.
    B2, D2, K2 = 170, 40, 7
    h2 = jax.random.normal(k_h2, (B2, D2), dtype=jnp.float32)
    y2 = jax.random.randint(k_y2, (B2,), 0, K2, dtype=jnp.int32)
    c2 = jax.random.normal(k_c2, (K2, D2), dtype=jnp.float32)
    loss2 = centroid_loss(h2, y2, c2, tile_rows=64)
    jax.block_until_ready(loss2)
    expected2 = _reference_loss(h2, y2, c2)
    err2 = abs(float(loss2) - float(expected2))
    assert err2 <= 0.1 + 0.01 * abs(float(expected2)), (float(loss2), float(expected2))

    print("KERNEL_OK")
</pallas_src>

<mosaic_0001>
module attributes {stable_mosaic.version = 11 : i64} {
  func.func @_centroid_partial_kernel(%arg0: i32, %arg1: i32, %arg2: memref<8x32xf32, #tpu.memory_space<vmem>>, %arg3: memref<8x1xi32, #tpu.memory_space<vmem>>, %arg4: memref<128x32xf32, #tpu.memory_space<vmem>>, %arg5: memref<1x128xf32, #tpu.memory_space<vmem>>, %arg6: memref<1x8x128xf32, #tpu.memory_space<vmem>>) attributes {dimension_semantics = [#tpu.dimension_semantics<parallel>, #tpu.dimension_semantics<arbitrary>], iteration_bounds = array<i64: 1, 1>, scalar_prefetch = 0 : i64, scratch_operands = 0 : i64, tpu.core_type = #tpu.core_type<tc>, window_params = [{transform_indices = @transform_0, window_bounds = array<i64: 8, 32>}, {transform_indices = @transform_1, window_bounds = array<i64: 8, 1>}, {pipeline_mode = #tpu.pipeline_mode<synchronous>, transform_indices = @transform_2, window_bounds = array<i64: 128, 32>}, {pipeline_mode = #tpu.pipeline_mode<synchronous>, transform_indices = @transform_3, window_bounds = array<i64: 1, 128>}, {transform_indices = @transform_4, window_bounds = array<i64: 1, 8, 128>}]} {
    %c0_i32 = arith.constant 0 : i32
    %0 = arith.cmpi eq, %arg1, %c0_i32 : i32
    %1 = arith.extui %0 : i1 to i32
    %c0_i32_0 = arith.constant 0 : i32
    %2 = arith.cmpi ne, %1, %c0_i32_0 : i32
    scf.if %2 {
      %cst_25 = arith.constant 0.000000e+00 : f32
      %58 = vector.broadcast %cst_25 : f32 to vector<1x8x128xf32>
      %c0_26 = arith.constant 0 : index
      %c0_27 = arith.constant 0 : index
      %c0_28 = arith.constant 0 : index
      %59 = vector.load %arg6[%c0_26, %c0_27, %c0_28] : memref<1x8x128xf32, #tpu.memory_space<vmem>>, vector<1x8x128xf32>
      tpu.vector_store %arg6[%c0_26, %c0_27, %c0_28], %58 {strides = array<i32>} : memref<1x8x128xf32, #tpu.memory_space<vmem>>, vector<1x8x128xf32>,
    } else {
    }
    %c0 = arith.constant 0 : index
    %c0_1 = arith.constant 0 : index
    %3 = vector.load %arg2[%c0, %c0_1] : memref<8x32xf32, #tpu.memory_space<vmem>>, vector<8x32xf32>
    %c0_2 = arith.constant 0 : index
    %c0_3 = arith.constant 0 : index
    %4 = vector.load %arg4[%c0_2, %c0_3] : memref<128x32xf32, #tpu.memory_space<vmem>>, vector<128x32xf32>
    %c0_4 = arith.constant 0 : index
    %c0_5 = arith.constant 0 : index
    %5 = vector.load %arg3[%c0_4, %c0_5] : memref<8x1xi32, #tpu.memory_space<vmem>>, vector<8x1xi32>
    %c0_6 = arith.constant 0 : index
    %c0_7 = arith.constant 0 : index
    %6 = vector.load %arg5[%c0_6, %c0_7] : memref<1x128xf32, #tpu.memory_space<vmem>>, vector<1x128xf32>
    %7 = arith.mulf %3, %3 : vector<8x32xf32>
    %cst = arith.constant dense<0.000000e+00> : vector<8xf32>
    %8 = vector.multi_reduction <add>, %7, %cst [1] : vector<8x32xf32> to vector<8xf32>
    %9 = vector.shape_cast %8 : vector<8xf32> to vector<8x1xf32>
    %cst_8 = arith.constant dense<0.000000e+00> : vector<8x128xf32>
    %10 = tpu.matmul %3, %4, %cst_8 {dimension_numbers = #tpu.dot_dimension_numbers<[1], [1], [0], [0], [0, 0, 1, 0], [], []>} : vector<8x32xf32>, vector<128x32xf32>, vector<8x128xf32> -> vector<8x128xf32>
    %11 = vector.broadcast %9 : vector<8x1xf32> to vector<8x128xf32>
    %12 = vector.broadcast %6 : vector<1x128xf32> to vector<8x128xf32>
    %13 = arith.addf %11, %12 : vector<8x128xf32>
    %cst_9 = arith.constant 2.000000e+00 : f32
    %14 = vector.broadcast %cst_9 : f32 to vector<8x128xf32>
    %15 = arith.mulf %14, %10 : vector<8x128xf32>
    %16 = arith.subf %13, %15 : vector<8x128xf32>
    %cst_10 = arith.constant 0.000000e+00 : f32
    %17 = vector.broadcast %cst_10 : f32 to vector<8x128xf32>
    %18 = arith.maximumf %16, %17 : vector<8x128xf32>
    %19 = tpu.iota {dimensions = array<i32: 1>} : vector<1x128xi32>
    %20 = vector.broadcast %19 : vector<1x128xi32> to vector<8x128xi32>
    %21 = vector.broadcast %5 : vector<8x1xi32> to vector<8x128xi32>
    %22 = arith.cmpi eq, %20, %21 : vector<8x128xi32>
    %cst_11 = arith.constant 0.000000e+00 : f32
    %23 = vector.broadcast %cst_11 : f32 to vector<8x128xf32>
    %24 = arith.select %22, %18, %23 : vector<8x128xi1>, vector<8x128xf32>
    %cst_12 = arith.constant dense<0.000000e+00> : vector<8xf32>
    %25 = vector.multi_reduction <add>, %24, %cst_12 [1] : vector<8x128xf32> to vector<8xf32>
    %26 = vector.shape_cast %25 : vector<8xf32> to vector<8x1xf32>
    %27 = math.sqrt %18 : vector<8x128xf32>
    %cst_13 = arith.constant 0.000000e+00 : f32
    %28 = vector.broadcast %cst_13 : f32 to vector<8x128xf32>
    %29 = arith.subf %28, %27 : vector<8x128xf32>
    %cst_14 = arith.constant dense<0xFF800000> : vector<8xf32>
    %30 = vector.multi_reduction <maximumf>, %29, %cst_14 [1] : vector<8x128xf32> to vector<8xf32>
    %31 = vector.shape_cast %30 : vector<8xf32> to vector<8x1xf32>
    %32 = vector.broadcast %31 : vector<8x1xf32> to vector<8x128xf32>
    %33 = arith.subf %29, %32 : vector<8x128xf32>
    %34 = math.exp %33 : vector<8x128xf32>
    %cst_15 = arith.constant dense<0.000000e+00> : vector<8xf32>
    %35 = vector.multi_reduction <add>, %34, %cst_15 [1] : vector<8x128xf32> to vector<8xf32>
    %36 = vector.shape_cast %35 : vector<8xf32> to vector<8x1xf32>
    %37 = math.log %36 : vector<8x1xf32>
    %38 = arith.addf %31, %37 : vector<8x1xf32>
    %39 = tpu.iota {dimensions = array<i32: 0>} : vector<8x1xi32>
    %c1_i32 = arith.constant 1 : i32
    %40 = arith.muli %arg0, %c1_i32 : i32
    %41 = arith.addi %40, %arg1 : i32
    %c8_i32 = arith.constant 8 : i32
    %42 = arith.muli %41, %c8_i32 : i32
    %43 = vector.broadcast %42 : i32 to vector<8x1xi32>
    %44 = arith.addi %39, %43 : vector<8x1xi32>
    %c8_i32_16 = arith.constant 8 : i32
    %45 = vector.broadcast %c8_i32_16 : i32 to vector<8x1xi32>
    %46 = arith.cmpi slt, %44, %45 : vector<8x1xi32>
    %47 = arith.addf %26, %38 : vector<8x1xf32>
    %cst_17 = arith.constant 0.000000e+00 : f32
    %48 = vector.broadcast %cst_17 : f32 to vector<8x1xf32>
    %49 = arith.select %46, %47, %48 : vector<8x1xi1>, vector<8x1xf32>
    %c0_18 = arith.constant 0 : index
    %c0_19 = arith.constant 0 : index
    %c0_20 = arith.constant 0 : index
    %50 = vector.load %arg6[%c0_18, %c0_19, %c0_20] : memref<1x8x128xf32, #tpu.memory_space<vmem>>, vector<1x8x128xf32>
    %51 = vector.shape_cast %49 : vector<8x1xf32> to vector<1x8x1xf32>
    %cst_21 = arith.constant dense<0.000000e+00> : vector<1xf32>
    %52 = vector.multi_reduction <add>, %51, %cst_21 [1, 2] : vector<1x8x1xf32> to vector<1xf32>
    %53 = vector.shape_cast %52 : vector<1xf32> to vector<1x1x1xf32>
    %54 = vector.extract %53[0, 0, 0] : f32 from vector<1x1x1xf32>
    %55 = vector.broadcast %54 : f32 to vector<1x8x128xf32>
    %56 = arith.addf %50, %55 : vector<1x8x128xf32>
    %c0_22 = arith.constant 0 : index
    %c0_23 = arith.constant 0 : index
    %c0_24 = arith.constant 0 : index
    %57 = vector.load %arg6[%c0_22, %c0_23, %c0_24] : memref<1x8x128xf32, #tpu.memory_space<vmem>>, vector<1x8x128xf32>
    tpu.vector_store %arg6[%c0_22, %c0_23, %c0_24], %56 {strides = array<i32>} : memref<1x8x128xf32, #tpu.memory_space<vmem>>, vector<1x8x128xf32>,
    return
  }
  func.func @transform_0(%arg0: i32, %arg1: i32) -> (i32, i32) {
    %c1_i32 = arith.constant 1 : i32
    %0 = arith.muli %arg0, %c1_i32 : i32
    %1 = arith.addi %0, %arg1 : i32
    %c0_i32 = arith.constant 0 : i32
    %2 = arith.minsi %1, %c0_i32 : i32
    %c0_i32_0 = arith.constant 0 : i32
    %c0_i32_1 = arith.constant 0 : i32
    return %2, %c0_i32_0 : i32, i32
  }
  func.func @transform_1(%arg0: i32, %arg1: i32) -> (i32, i32) {
    %c1_i32 = arith.constant 1 : i32
    %0 = arith.muli %arg0, %c1_i32 : i32
    %1 = arith.addi %0, %arg1 : i32
    %c0_i32 = arith.constant 0 : i32
    %2 = arith.minsi %1, %c0_i32 : i32
    %c0_i32_0 = arith.constant 0 : i32
    %c0_i32_1 = arith.constant 0 : i32
    return %2, %c0_i32_0 : i32, i32
  }
  func.func @transform_2(%arg0: i32, %arg1: i32) -> (i32, i32) {
    %c0_i32 = arith.constant 0 : i32
    %c0_i32_0 = arith.constant 0 : i32
    %c0_i32_1 = arith.constant 0 : i32
    return %c0_i32, %c0_i32_0 : i32, i32
  }
  func.func @transform_3(%arg0: i32, %arg1: i32) -> (i32, i32) {
    %c0_i32 = arith.constant 0 : i32
    %c0_i32_0 = arith.constant 0 : i32
    %c0_i32_1 = arith.constant 0 : i32
    return %c0_i32, %c0_i32_0 : i32, i32
  }
  func.func @transform_4(%arg0: i32, %arg1: i32) -> (i32, i32, i32) {
    %c0_i32 = arith.constant 0 : i32
    %c0_i32_0 = arith.constant 0 : i32
    %c0_i32_1 = arith.constant 0 : i32
    return %arg0, %c0_i32, %c0_i32_0 : i32, i32, i32
  }
}

</mosaic_0001>

<llo_original>
// kernel: tpu_custom_call.1
$region0: #{tpu_custom_call.1}
  #allocation0 [shape = 'u32[]', space=smem, size = 0x4, offset = 0x4, fixed_abs, tag = 'smem constant byte address 0x4 - core index']
  #allocation1 [shape = 'u32[72,128]{1,0:T(1,128)}', space=vmem, size = 0x9000, scoped, tag = 'internal scratch']
  %s0 = inlined_call_operand.vmem [shape: f32[8,32], index: 0, kind: input, shape index: {}]
  %s1 = inlined_call_operand.vmem [shape: s32[8,1], index: 1, kind: input, shape index: {}]
  %s2 = inlined_call_operand.vmem [shape: f32[128,32], index: 2, kind: input, shape index: {}]
  %s3 = inlined_call_operand.vmem [shape: f32[1,128], index: 3, kind: input, shape index: {}]
  %s4 = inlined_call_operand.hbm [shape: f32[1,8,128], index: 4, kind: output, shape index: {}]
  %s5 = sld [smem:[#allocation0]]
  $region30: #{tpu_custom_call.1} parent=0
    _
  %s7 = ssub.s32 1, %s5
  %s8 = scalar_select 0, %s7, %s5
  $region1: #{tpu_custom_call.1} parent=0
    #allocation2 [shape = 'u8[4096]{0}', space=vmem, size = 0x1000, scoped, tag = 'output window, operand 0, single buffered']
    #allocation3 [shape = 's32[1]{0}', space=sflag, size = 0x4, scoped, tag = 'scoped memory for tpu_custom_call.1']
    %9 = vsyncpa [#allocation3], 0
    // Predicated region
    $region2: #{tpu_custom_call.1} parent=1 // pred_check
      _
    $region3: #{tpu_custom_call.1} parent=1 // pred_check_branch
      %11 = sbr.rel (0) target = $region5
    $region4: #{tpu_custom_call.1} parent=1 // pred_region
      %s12 = sadd.s32 0, 0
      %p13 = scmp.lt.s32.totalorder %s12, 0
      %s14 = scalar_select %p13, %s12, 0
      %p15 = scmp.lt.s32.totalorder %s14, 0
      %s16 = scalar_select %p15, %s14, 0
      %s17 = smul.addr %s16, 8
      %s18 = scalar_lea.vmem %s0, %s17
      %s19 = sadd.s32 0, 0
      %p20 = scmp.lt.s32.totalorder %s19, 0
      %s21 = scalar_select %p20, %s19, 0
    $region5: #{tpu_custom_call.1} parent=1 // pred_fallthru
      _
    // Predicated region
    $region6: #{tpu_custom_call.1} parent=1 // pred_check
      _
    $region7: #{tpu_custom_call.1} parent=1 // pred_check_branch
      %23 = sbr.rel (0) target = $region9
    $region8: #{tpu_custom_call.1} parent=1 // pred_region
      %s24 = sadd.s32 0, 0
      %p25 = scmp.lt.s32.totalorder %s24, 0
      %s26 = scalar_select %p25, %s24, 0
      %p27 = scmp.lt.s32.totalorder %s26, 0
      %s28 = scalar_select %p27, %s26, 0
      %s29 = smul.addr %s28, 8
      %s30 = scalar_lea.vmem %s1, %s29
      %s31 = sadd.s32 0, 0
      %p32 = scmp.lt.s32.totalorder %s31, 0
      %s33 = scalar_select %p32, %s31, 0
    $region9: #{tpu_custom_call.1} parent=1 // pred_fallthru
      _
    // Predicated region
    $region10: #{tpu_custom_call.1} parent=1 // pred_check
      _
    $region11: #{tpu_custom_call.1} parent=1 // pred_check_branch
      %35 = sbr.rel (0) target = $region13
    $region12: #{tpu_custom_call.1} parent=1 // pred_region
      _
    $region13: #{tpu_custom_call.1} parent=1 // pred_fallthru
      _
    // Predicated region
    $region14: #{tpu_custom_call.1} parent=1 // pred_check
      _
    $region15: #{tpu_custom_call.1} parent=1 // pred_check_branch
      %37 = sbr.rel (0) target = $region17
    $region16: #{tpu_custom_call.1} parent=1 // pred_region
      _
    $region17: #{tpu_custom_call.1} parent=1 // pred_fallthru
      _
    %s38 = sadd.s32 0, 0
    %p39 = scmp.lt.s32.totalorder %s38, 0
    %s40 = scalar_select %p39, %s38, 0
    %p41 = scmp.lt.s32.totalorder %s40, 0
    %s42 = scalar_select %p41, %s40, 0
    %s43 = smul.addr %s42, 8
    %s44 = scalar_lea.vmem %s0, %s43
    %s45 = sadd.s32 0, 0
    %p46 = scmp.lt.s32.totalorder %s45, 0
    %s47 = scalar_select %p46, %s45, 0
    %p48 = scmp.lt.s32.totalorder %s47, 0
    %s49 = scalar_select %p48, %s47, 0
    %s50 = smul.addr %s49, 8
    %s51 = scalar_lea.vmem %s1, %s50
    %s52 = sadd.s32 0, 0
    %p53 = scmp.lt.s32.totalorder %s52, 0
    %s54 = scalar_select %p53, %s52, 0
    %p55 = scmp.lt.s32.totalorder %s54, 0
    %s56 = scalar_select %p55, %s54, 0
    %s57 = smul.addr %s56, 8
    %s58 = scalar_lea.vmem %s0, %s57
    %s59 = sadd.s32 0, 0
    %p60 = scmp.lt.s32.totalorder %s59, 0
    %s61 = scalar_select %p60, %s59, 0
    %s62 = sadd.s32 0, 0
    %p63 = scmp.lt.s32.totalorder %s62, 0
    %s64 = scalar_select %p63, %s62, 0
    %p65 = scmp.lt.s32.totalorder %s64, 0
    %s66 = scalar_select %p65, %s64, 0
    %s67 = smul.addr %s66, 8
    %s68 = scalar_lea.vmem %s1, %s67
    %s69 = sadd.s32 0, 0
    %p70 = scmp.lt.s32.totalorder %s69, 0
    %s71 = scalar_select %p70, %s69, 0
    %p72 = scmp.eq.s32.totalorder 0, 0
    // Predicated region
    $region18: #{tpu_custom_call.1} parent=1 // pred_check
      %p73 = pneg %p72
    $region19: #{tpu_custom_call.1} parent=1 // pred_check_branch
      %75 = sbr.rel (%p73) target = $region21
    $region20: #{tpu_custom_call.1} parent=1 // pred_region
      %76 = vst [vmem:[#allocation2] sm:$0xff] 0.0
    $region21: #{tpu_custom_call.1} parent=1 // pred_fallthru
      _
    %v77 = vld [vmem:[%s58] sm:$0xff]
    %v78 = vld [vmem:[%s2] sm:$0xff]
    %v79 = vld [vmem:[%s2 + $0x8] sm:$0xff]
    %v80 = vld [vmem:[%s2 + $0x10] sm:$0xff]
    %v81 = vld [vmem:[%s2 + $0x18] sm:$0xff]
    %v82 = vld [vmem:[%s2 + $0x20] sm:$0xff]
    %v83 = vld [vmem:[%s2 + $0x28] sm:$0xff]
    %v84 = vld [vmem:[%s2 + $0x30] sm:$0xff]
    %v85 = vld [vmem:[%s2 + $0x38] sm:$0xff]
    %v86 = vld [vmem:[%s2 + $0x40] sm:$0xff]
    %v87 = vld [vmem:[%s2 + $0x48] sm:$0xff]
    %v88 = vld [vmem:[%s2 + $0x50] sm:$0xff]
    %v89 = vld [vmem:[%s2 + $0x58] sm:$0xff]
    %v90 = vld [vmem:[%s2 + $0x60] sm:$0xff]
    %v91 = vld [vmem:[%s2 + $0x68] sm:$0xff]
    %v92 = vld [vmem:[%s2 + $0x70] sm:$0xff]
    %v93 = vld [vmem:[%s2 + $0x78] sm:$0xff]
    %v94 = vld [vmem:[%s68] sm:$0xff]
    %v95 = vld [vmem:[%s3] sm:$0x1]
    %v96 = vmul.f32 %v77, %v77
    %vm97 = vcmask 261120
    %v98 = vsel %vm97, %v96, 0.0
    %99 = vadd.xlane.f32.xlu0 %v98
    %v100 = vpop.xlane.xlu0 %99
    %v102 = vsel %vm97, %v77, 0
    %v105 = vsel %vm97, %v78, 0
    %v108 = vsel %vm97, %v79, 0
    %v111 = vsel %vm97, %v80, 0
    %v114 = vsel %vm97, %v81, 0
    %v117 = vsel %vm97, %v82, 0
    %v120 = vsel %vm97, %v83, 0
    %v123 = vsel %vm97, %v84, 0
    %v126 = vsel %vm97, %v85, 0
    %v129 = vsel %vm97, %v86, 0
    %v132 = vsel %vm97, %v87, 0
    %v135 = vsel %vm97, %v88, 0
    %v138 = vsel %vm97, %v89, 0
    %v141 = vsel %vm97, %v90, 0
    %v144 = vsel %vm97, %v91, 0
    %v147 = vsel %vm97, %v92, 0
    %v150 = vsel %vm97, %v93, 0
    %152 = vmatpush.xpose.msra.mxu0 %v150
    %153 = vmatpush.xpose.msra.mxu0 %v147
    %154 = vmatpush.xpose.msra.mxu0 %v144
    %155 = vmatpush.xpose.msra.mxu0 %v141
    %156 = vmatpush.xpose.msra.mxu0 %v138
    %157 = vmatpush.xpose.msra.mxu0 %v135
    %158 = vmatpush.xpose.msra.mxu0 %v132
    %159 = vmatpush.xpose.msra.mxu0 %v129
    %160 = vmatpush.xpose.msra.mxu0 %v126
    %161 = vmatpush.xpose.msra.mxu0 %v123
    %162 = vmatpush.xpose.msra.mxu0 %v120
    %163 = vmatpush.xpose.msra.mxu0 %v117
    %164 = vmatpush.xpose.msra.mxu0 %v114
    %165 = vmatpush.xpose.msra.mxu0 %v111
    %166 = vmatpush.xpose.msra.mxu0 %v108
    %167 = vmatpush.xpose.msra.mxu0 %v105
    %168 = vmatmul.f32.gmra.mxu0 %v102
    %v169 = vpop.f32.mrf.mxu0
    %v170 = vadd.f32 0.0, %v169
    %171 = vdwg.mxu0
    %v173 = vperm.slane %v95, 0
    %v175 = vadd.f32 %v100, %v173
    %v176 = vmul.f32 %v170, 2.0
    %v177 = vsub.f32 %v175, %v176
    %v178 = vmax.f32 %v177, 0.0
    %v179 = vlaneseq
    %v180 = vand.u32 %v179, 127
    %181 = vset.pattern.permute.xlu0 0
    %182 = vperm.xlu0 %181, %v94
    %v183 = vpop.permute.xlu0 %182
    %vm184 = vcmp.eq.s32.totalorder %v180, %v183
    %v185 = vsel %vm184, %v178, 0.0
    %186 = vadd.xlane.f32.xlu0 %v185
    %v187 = vpop.xlane.xlu0 %186
    %v188 = vrsqrt.pop %v178
    %v189 = vmul.f32 %v188, %v178
    %v190 = vmul.f32 %v189, %v188
    %v191 = vmul.f32 0.5, %v190
    %v192 = vsub.f32 1.5, %v191
    %v193 = vmul.f32 %v188, %v192
    %v194 = vmul.f32 %v178, %v193
    %vm195 = vcmp.eq.f32.partialorder %v178, inf
    %v196 = vsel %vm195, %v178, %v194
    %vm197 = vcmp.eq.f32.partialorder %v178, 0.0
    %v198 = vand.u32 %v178, 2147483648
    %v199 = vsel %vm197, %v198, %v196
    %v200 = vsub.f32 0.0, %v199
    %201 = vmax.xlane.f32.xlu0 %v200
    %v202 = vpop.xlane.xlu0 %201
    %v203 = vsub.f32 %v200, %v202
    %v204 = vmul.f32 %v203, 1.442695
    %v205 = vpow.pop %v204
    %206 = vadd.xlane.f32.xlu0 %v205
    %v207 = vpop.xlane.xlu0 %206
    %v208 = vlog2.pop %v207
    %v209 = vmul.f32 %v208, 0.6931472
    %v210 = vadd.f32 %v202, %v209
    %v211 = vlaneseq
    %v212 = vshrl.u32 %v211, 7
    %s213 = sadd.s32 0, 0
    %s214 = smul.u32 %s213, 8
    %v215 = vstv %s214
    %v216 = vadd.s32 %v212, %v215
    %vm217 = vcmp.lt.s32.totalorder %v216, 8
    %v218 = vadd.f32 %v187, %v210
    %v219 = vsel %vm217, %v218, 0.0
    %v220 = vld [vmem:[#allocation2] sm:$0xff]
    %vm221 = vcmask 7168
    %v222 = vsel %vm221, %v219, 0.0
    %223 = vadd.xlane.f32.xlu0 %v222
    %v224 = vpop.xlane.xlu0 %223
    %v225 = vrot.slane %v224, 4
    %v226 = vadd.f32 %v224, %v225
    %v227 = vrot.slane %v226, 2
    %v228 = vadd.f32 %v226, %v227
    %v229 = vrot.slane %v228, 1
    %v230 = vadd.f32 %v228, %v229
    %s231 = vtos %v230
    %v232 = vstv %s231
    %v233 = vadd.f32 %v220, %v232
    %234 = vst [vmem:[#allocation2] sm:$0xff] %v233
    // Predicated region
    $region22: #{tpu_custom_call.1} parent=1 // pred_check
      _
    $region23: #{tpu_custom_call.1} parent=1 // pred_check_branch
      %236 = sbr.rel (0) target = $region25
    $region24: #{tpu_custom_call.1} parent=1 // pred_region
      %238 = vsyncadd [#allocation3], 0
      %s240 = sshll.u32 [#allocation2], 4
      %s241 = int_to_ptr.vmem [resolvable:$true] %s240
      %s242 = sshll.u32 %s4, 4
      %s243 = int_to_ptr.hbm [resolvable:$true] %s242
      %245 = dma.vmem_to_hbm [thread:$0]  %s241, 128, %s243, [#allocation3]
    $region25: #{tpu_custom_call.1} parent=1 // pred_fallthru
      _
    // Predicated region
    $region26: #{tpu_custom_call.1} parent=1 // pred_check
      _
    $region27: #{tpu_custom_call.1} parent=1 // pred_check_branch
      %247 = sbr.rel (0) target = $region29
    $region28: #{tpu_custom_call.1} parent=1 // pred_region
      %249 = dma.done [#allocation3], 128
    $region29: #{tpu_custom_call.1} parent=1 // pred_fallthru
      _
    %250 = vsyncpa [#allocation3], 1

</llo_original>
